<compile_context>
chip_gen: v5e
topology: v5e:2x2
jax: 0.10.0
libtpu: 0.0.40
codegen_flags: <defaults>
</compile_context>

<pallas_src>
import functools

import jax
import jax.numpy as jnp
from jax.experimental import pallas as pl
from jax.experimental.pallas import tpu as pltpu

N_STEPS = 8   # fixed RK45 steps from t0 to t1
KSIZE = 3     # Conv1d kernel size (padding = 1, stride = 1)

# Dormand-Prince (dopri5) Butcher tableau, 5th-order solution weights.
_A = (
    (1 / 5,),
    (3 / 40, 9 / 40),
    (44 / 45, -56 / 15, 32 / 9),
    (19372 / 6561, -25360 / 2187, 64448 / 6561, -212 / 729),
    (9017 / 3168, -355 / 33, 46732 / 5247, 49 / 176, -5103 / 18656),
)
_B = (35 / 384, 0.0, 500 / 1113, 125 / 192, -2187 / 6784, 11 / 84)


def _ode_block_kernel(t_ref, x_ref, w_ref, b_ref, out_ref, *, L):
    """Integrate dy/dt = tanh(conv1d(y) + b) from t[0] to t[1]; write y(t[1]).

    Lane-dense layout: channels on sublanes, (batch, position) on lanes.
      t_ref   : SMEM (2,)        f32  -- [t0, t1]
      x_ref   : VMEM (C, NB*L)   f32  -- state tile: NB whole sequences
      w_ref   : VMEM (C, 3*C)    f32  -- fused conv taps, w[o, k*C + i] = W[o, i, k]
      b_ref   : VMEM (C, 1)      f32  -- conv bias (column)
      out_ref : VMEM (C, NB*L)   f32
    """
    C, TL = x_ref.shape
    y0 = x_ref[...]
    w = w_ref[...]

    # Hoisted loop invariants (JAX does not CSE broadcast_in_dim; the RK loop
    # below evaluates odefunc 8 steps x 6 stages = 48 times).
    bias = jnp.broadcast_to(b_ref[...], (C, TL))
    pos = jax.lax.broadcasted_iota(jnp.int32, (C, TL), 1) % L
    mask_prev = (pos != 0).astype(jnp.float32)      # zero conv padding at l == 0
    mask_next = (pos != L - 1).astype(jnp.float32)  # zero conv padding at l == L-1

    def odefunc(y):
        # Conv1d(k=3, pad=1): out[:, l] = W0 @ y[:, l-1] + W1 @ y[:, l] + W2 @ y[:, l+1]
        # +-1 shifts along the lane (position) axis; the masks kill the padded
        # columns and any cross-sequence wrap inside the tile (sequence
        # boundaries always land on pos % L == 0 / L-1).
        y_prev = mask_prev * jnp.roll(y, 1, axis=1)
        y_next = mask_next * jnp.roll(y, -1, axis=1)
        # Fuse the three taps into a single MXU contraction of depth 3C with a
        # lane-dense (C, TL) output.
        ycat = jnp.concatenate([y_prev, y, y_next], axis=0)          # (3C, TL)
        z = jnp.dot(w, ycat, preferred_element_type=jnp.float32) + bias
        return jnp.tanh(z)

    dt = (t_ref[1] - t_ref[0]) / jnp.float32(N_STEPS)

    def rk_step(_, y):
        k1 = odefunc(y)
        k2 = odefunc(y + dt * (_A[0][0] * k1))
        k3 = odefunc(y + dt * (_A[1][0] * k1 + _A[1][1] * k2))
        k4 = odefunc(y + dt * (_A[2][0] * k1 + _A[2][1] * k2 + _A[2][2] * k3))
        k5 = odefunc(y + dt * (_A[3][0] * k1 + _A[3][1] * k2 + _A[3][2] * k3
                               + _A[3][3] * k4))
        k6 = odefunc(y + dt * (_A[4][0] * k1 + _A[4][1] * k2 + _A[4][2] * k3
                               + _A[4][3] * k4 + _A[4][4] * k5))
        return y + dt * (_B[0] * k1 + _B[2] * k3 + _B[3] * k4
                         + _B[4] * k5 + _B[5] * k6)

    out_ref[...] = jax.lax.fori_loop(0, N_STEPS, rk_step, y0)


def _pick_batch_tile(N, C, L):
    """Largest per-tile batch count NB that (a) keeps the lane dim either a
    multiple of 128 or the full extent and (b) fits a conservative VMEM budget
    (~16 live f32 tile-size arrays, double-buffered I/O) safe for v7x 64 MiB."""
    budget_elems = (24 << 20) // (4 * 16)
    candidates = [nb for nb in range(1, N + 1)
                  if N % nb == 0 and (nb == N or (nb * L) % 128 == 0)]
    fitting = [nb for nb in candidates if nb * L * C <= budget_elems]
    return max(fitting) if fitting else min(candidates)


def _tpu_compiler_params(**kwargs):
    cls = getattr(pltpu, "CompilerParams", None) or getattr(pltpu, "TPUCompilerParams", None)
    return cls(**kwargs) if cls is not None else None


@jax.jit
def ode_block_forward(x_ncl, weight, bias, t):
    """ODEBlock.forward.  x_ncl: (N, C, L); weight: (C_out, C_in, K); bias: (C,)."""
    N, C, L = x_ncl.shape
    NT = N * L

    # Lane-dense layout: channels -> sublanes, (batch, position) -> lanes.
    # (N, C, L) -> (C, N, L) -> (C, N*L).
    x2d = jnp.transpose(x_ncl, (1, 0, 2)).reshape(C, NT).astype(jnp.float32)
    # Fused conv taps: (C_out, C_in, K) -> (C_out, K*C_in), [o, k*C + i] = W[o, i, k].
    w2d = jnp.transpose(weight, (0, 2, 1)).reshape(C, KSIZE * C).astype(jnp.float32)
    bcol = bias.reshape(C, 1).astype(jnp.float32)

    NB = _pick_batch_tile(N, C, L)       # whole sequences per tile (never split L)
    TL = NB * L
    grid = (N // NB,)

    extra = {}
    cp = _tpu_compiler_params(dimension_semantics=("parallel",))
    if cp is not None:
        extra["compiler_params"] = cp
    if hasattr(pl, "CostEstimate"):
        n_eval = N_STEPS * 6
        extra["cost_estimate"] = pl.CostEstimate(
            flops=int(n_eval * (2 * C * (KSIZE * C) * NT + 10 * C * NT)
                      + N_STEPS * 12 * C * NT),
            transcendentals=int(n_eval * C * NT),
            bytes_accessed=int(4 * (2 * C * NT + C * KSIZE * C + C + 2)),
        )

    out2d = pl.pallas_call(
        functools.partial(_ode_block_kernel, L=L),
        out_shape=jax.ShapeDtypeStruct((C, NT), jnp.float32),
        grid=grid,
        in_specs=[
            pl.BlockSpec(memory_space=pltpu.MemorySpace.SMEM),   # t = [t0, t1]
            pl.BlockSpec((C, TL), lambda i: (0, i)),             # state tile
            pl.BlockSpec((C, KSIZE * C), lambda i: (0, 0)),      # fused conv taps
            pl.BlockSpec((C, 1), lambda i: (0, 0)),              # bias column
        ],
        out_specs=pl.BlockSpec((C, TL), lambda i: (0, i)),
        input_output_aliases={1: 0},                             # out aliases x2d slab
        **extra,
    )(t.astype(jnp.float32), x2d, w2d, bcol)

    return jnp.transpose(out2d.reshape(C, N, L), (1, 0, 2))


def _reference(x_ncl, weight, bias, t):
    """Pure-JAX reference: same fixed-step dopri5 tableau + lax conv."""
    def odefunc(y):
        out = jax.lax.conv_general_dilated(
            y, weight, window_strides=(1,), padding=((1, 1),),
            dimension_numbers=("NCH", "OIH", "NCH"))
        return jnp.tanh(out + bias[None, :, None])

    dt = (t[1] - t[0]) / N_STEPS
    y = x_ncl.astype(jnp.float32)
    for _ in range(N_STEPS):
        k1 = odefunc(y)
        k2 = odefunc(y + dt * (_A[0][0] * k1))
        k3 = odefunc(y + dt * (_A[1][0] * k1 + _A[1][1] * k2))
        k4 = odefunc(y + dt * (_A[2][0] * k1 + _A[2][1] * k2 + _A[2][2] * k3))
        k5 = odefunc(y + dt * (_A[3][0] * k1 + _A[3][1] * k2 + _A[3][2] * k3
                               + _A[3][3] * k4))
        k6 = odefunc(y + dt * (_A[4][0] * k1 + _A[4][1] * k2 + _A[4][2] * k3
                               + _A[4][3] * k4 + _A[4][4] * k5))
        y = y + dt * (_B[0] * k1 + _B[2] * k3 + _B[3] * k4
                      + _B[4] * k5 + _B[5] * k6)
    return y


if __name__ == "__main__":
    key = jax.random.PRNGKey(0)
    kx, kw, kb = jax.random.split(key, 3)

    N, C, L = 2, 4, 16            # batch, channels, sequence length
    x = jax.random.normal(kx, (N, C, L), dtype=jnp.float32)

    # Deterministic Conv1d-style init (PyTorch default bound = 1/sqrt(C_in*K)).
    bound = 1.0 / float(C * KSIZE) ** 0.5
    weight = jax.random.uniform(kw, (C, C, KSIZE), jnp.float32, -bound, bound)
    bias = jax.random.uniform(kb, (C,), jnp.float32, -bound, bound)

    # register_buffer('t', tensor([t0, t1]).float()) with t0=0, t1=1
    t = jnp.array([0.0, 1.0], dtype=jnp.float32)

    out = jax.block_until_ready(ode_block_forward(x, weight, bias, t))
    assert out.shape == x.shape and out.dtype == jnp.float32

    ref = _reference(x, weight, bias, t)
    max_err = float(jnp.max(jnp.abs(out - ref)))
    assert max_err < 2e-3, f"mismatch vs reference: {max_err}"

    print("KERNEL_OK")
</pallas_src>

<mosaic_0001>
module attributes {stable_mosaic.version = 11 : i64} {
  func.func @_ode_block_kernel(%arg0: i32, %arg1: memref<2xf32, #tpu.memory_space<smem>>, %arg2: memref<4x32xf32, #tpu.memory_space<vmem>>, %arg3: memref<4x12xf32, #tpu.memory_space<vmem>>, %arg4: memref<4x1xf32, #tpu.memory_space<vmem>>, %arg5: memref<4x32xf32, #tpu.memory_space<vmem>>) attributes {dimension_semantics = [#tpu.dimension_semantics<parallel>], iteration_bounds = array<i64: 1>, scalar_prefetch = 0 : i64, scratch_operands = 0 : i64, tpu.core_type = #tpu.core_type<tc>, window_params = [{transform_indices = @transform_0, window_bounds = array<i64: 2>}, {transform_indices = @transform_1, window_bounds = array<i64: 4, 32>}, {pipeline_mode = #tpu.pipeline_mode<synchronous>, transform_indices = @transform_2, window_bounds = array<i64: 4, 12>}, {pipeline_mode = #tpu.pipeline_mode<synchronous>, transform_indices = @transform_3, window_bounds = array<i64: 4, 1>}, {transform_indices = @transform_4, window_bounds = array<i64: 4, 32>}]} {
    %c0 = arith.constant 0 : index
    %c0_0 = arith.constant 0 : index
    %0 = vector.load %arg2[%c0, %c0_0] : memref<4x32xf32, #tpu.memory_space<vmem>>, vector<4x32xf32>
    %c0_1 = arith.constant 0 : index
    %c0_2 = arith.constant 0 : index
    %1 = vector.load %arg3[%c0_1, %c0_2] : memref<4x12xf32, #tpu.memory_space<vmem>>, vector<4x12xf32>
    %c0_3 = arith.constant 0 : index
    %c0_4 = arith.constant 0 : index
    %2 = vector.load %arg4[%c0_3, %c0_4] : memref<4x1xf32, #tpu.memory_space<vmem>>, vector<4x1xf32>
    %3 = vector.shape_cast %2 : vector<4x1xf32> to vector<4x1xf32>
    %4 = vector.broadcast %3 : vector<4x1xf32> to vector<4x32xf32>
    %5 = tpu.iota {dimensions = array<i32: 1>} : vector<4x32xi32>
    %c16_i32 = arith.constant 16 : i32
    %c0_i32 = arith.constant 0 : i32
    %6 = arith.cmpi eq, %c16_i32, %c0_i32 : i32
    %c1_i32 = arith.constant 1 : i32
    %7 = arith.select %6, %c1_i32, %c16_i32 : i32
    %8 = vector.broadcast %7 : i32 to vector<4x32xi32>
    %9 = arith.remsi %5, %8 : vector<4x32xi32>
    %c0_i32_5 = arith.constant 0 : i32
    %10 = vector.broadcast %c0_i32_5 : i32 to vector<4x32xi32>
    %11 = arith.cmpi ne, %9, %10 : vector<4x32xi32>
    %c0_i32_6 = arith.constant 0 : i32
    %12 = vector.broadcast %c0_i32_6 : i32 to vector<4x32xi32>
    %13 = arith.cmpi slt, %9, %12 : vector<4x32xi32>
    %c0_i32_7 = arith.constant 0 : i32
    %14 = arith.cmpi slt, %7, %c0_i32_7 : i32
    %15 = vector.broadcast %14 : i1 to vector<4x32xi1>
    %16 = vector.broadcast %15 : vector<4x32xi1> to vector<4x32xi1>
    %17 = arith.xori %13, %16 : vector<4x32xi1>
    %18 = arith.andi %17, %11 : vector<4x32xi1>
    %19 = vector.broadcast %7 : i32 to vector<4x32xi32>
    %20 = arith.addi %9, %19 : vector<4x32xi32>
    %21 = arith.select %18, %20, %9 : vector<4x32xi1>, vector<4x32xi32>
    %c0_i32_8 = arith.constant 0 : i32
    %22 = vector.broadcast %c0_i32_8 : i32 to vector<4x32xi32>
    %23 = arith.cmpi ne, %21, %22 : vector<4x32xi32>
    %24 = arith.extui %23 : vector<4x32xi1> to vector<4x32xi32>
    %25 = arith.sitofp %24 : vector<4x32xi32> to vector<4x32xf32>
    %c15_i32 = arith.constant 15 : i32
    %26 = vector.broadcast %c15_i32 : i32 to vector<4x32xi32>
    %27 = arith.cmpi ne, %21, %26 : vector<4x32xi32>
    %28 = arith.extui %27 : vector<4x32xi1> to vector<4x32xi32>
    %29 = arith.sitofp %28 : vector<4x32xi32> to vector<4x32xf32>
    %c1 = arith.constant 1 : index
    %30 = memref.load %arg1[%c1] : memref<2xf32, #tpu.memory_space<smem>>
    %c0_9 = arith.constant 0 : index
    %31 = memref.load %arg1[%c0_9] : memref<2xf32, #tpu.memory_space<smem>>
    %32 = arith.subf %30, %31 : f32
    %cst = arith.constant 8.000000e+00 : f32
    %33 = arith.divf %32, %cst : f32
    %c0_i32_10 = arith.constant 0 : i32
    %c8_i32 = arith.constant 8 : i32
    %34 = arith.addi %c0_i32_10, %c8_i32 : i32
    %c1_i32_11 = arith.constant 1 : i32
    %35 = scf.for %arg6 = %c0_i32_10 to %34 step %c1_i32_11 iter_args(%arg7 = %0) -> (vector<4x32xf32>)  : i32 {
      %37 = vector.extract_strided_slice %arg7 {offsets = [0, 31], sizes = [4, 1], strides = [1, 1]} : vector<4x32xf32> to vector<4x1xf32>
      %38 = vector.extract_strided_slice %arg7 {offsets = [0, 0], sizes = [4, 31], strides = [1, 1]} : vector<4x32xf32> to vector<4x31xf32>
      %39 = tpu.concatenate %37, %38 in 1 : vector<4x1xf32>, vector<4x31xf32> -> vector<4x32xf32>
      %40 = arith.mulf %25, %39 : vector<4x32xf32>
      %41 = vector.extract_strided_slice %arg7 {offsets = [0, 1], sizes = [4, 31], strides = [1, 1]} : vector<4x32xf32> to vector<4x31xf32>
      %42 = vector.extract_strided_slice %arg7 {offsets = [0, 0], sizes = [4, 1], strides = [1, 1]} : vector<4x32xf32> to vector<4x1xf32>
      %43 = tpu.concatenate %41, %42 in 1 : vector<4x31xf32>, vector<4x1xf32> -> vector<4x32xf32>
      %44 = arith.mulf %29, %43 : vector<4x32xf32>
      %45 = tpu.concatenate %40, %arg7, %44 in 0 : vector<4x32xf32>, vector<4x32xf32>, vector<4x32xf32> -> vector<12x32xf32>
      %cst_14 = arith.constant dense<0.000000e+00> : vector<4x32xf32>
      %46 = tpu.matmul %1, %45, %cst_14 {dimension_numbers = #tpu.dot_dimension_numbers<[1], [0], [0], [1], [0, 0, 1, 1], [], []>} : vector<4x12xf32>, vector<12x32xf32>, vector<4x32xf32> -> vector<4x32xf32>
      %47 = arith.addf %46, %4 : vector<4x32xf32>
      %48 = math.tanh %47 : vector<4x32xf32>
      %cst_15 = arith.constant 2.000000e-01 : f32
      %49 = vector.broadcast %cst_15 : f32 to vector<4x32xf32>
      %50 = arith.mulf %49, %48 : vector<4x32xf32>
      %51 = vector.broadcast %33 : f32 to vector<4x32xf32>
      %52 = arith.mulf %51, %50 : vector<4x32xf32>
      %53 = arith.addf %arg7, %52 : vector<4x32xf32>
      %54 = vector.extract_strided_slice %53 {offsets = [0, 31], sizes = [4, 1], strides = [1, 1]} : vector<4x32xf32> to vector<4x1xf32>
      %55 = vector.extract_strided_slice %53 {offsets = [0, 0], sizes = [4, 31], strides = [1, 1]} : vector<4x32xf32> to vector<4x31xf32>
      %56 = tpu.concatenate %54, %55 in 1 : vector<4x1xf32>, vector<4x31xf32> -> vector<4x32xf32>
      %57 = arith.mulf %25, %56 : vector<4x32xf32>
      %58 = vector.extract_strided_slice %53 {offsets = [0, 1], sizes = [4, 31], strides = [1, 1]} : vector<4x32xf32> to vector<4x31xf32>
      %59 = vector.extract_strided_slice %53 {offsets = [0, 0], sizes = [4, 1], strides = [1, 1]} : vector<4x32xf32> to vector<4x1xf32>
      %60 = tpu.concatenate %58, %59 in 1 : vector<4x31xf32>, vector<4x1xf32> -> vector<4x32xf32>
      %61 = arith.mulf %29, %60 : vector<4x32xf32>
      %62 = tpu.concatenate %57, %53, %61 in 0 : vector<4x32xf32>, vector<4x32xf32>, vector<4x32xf32> -> vector<12x32xf32>
      %cst_16 = arith.constant dense<0.000000e+00> : vector<4x32xf32>
      %63 = tpu.matmul %1, %62, %cst_16 {dimension_numbers = #tpu.dot_dimension_numbers<[1], [0], [0], [1], [0, 0, 1, 1], [], []>} : vector<4x12xf32>, vector<12x32xf32>, vector<4x32xf32> -> vector<4x32xf32>
      %64 = arith.addf %63, %4 : vector<4x32xf32>
      %65 = math.tanh %64 : vector<4x32xf32>
      %cst_17 = arith.constant 7.500000e-02 : f32
      %66 = vector.broadcast %cst_17 : f32 to vector<4x32xf32>
      %67 = arith.mulf %66, %48 : vector<4x32xf32>
      %cst_18 = arith.constant 2.250000e-01 : f32
      %68 = vector.broadcast %cst_18 : f32 to vector<4x32xf32>
      %69 = arith.mulf %68, %65 : vector<4x32xf32>
      %70 = arith.addf %67, %69 : vector<4x32xf32>
      %71 = vector.broadcast %33 : f32 to vector<4x32xf32>
      %72 = arith.mulf %71, %70 : vector<4x32xf32>
      %73 = arith.addf %arg7, %72 : vector<4x32xf32>
      %74 = vector.extract_strided_slice %73 {offsets = [0, 31], sizes = [4, 1], strides = [1, 1]} : vector<4x32xf32> to vector<4x1xf32>
      %75 = vector.extract_strided_slice %73 {offsets = [0, 0], sizes = [4, 31], strides = [1, 1]} : vector<4x32xf32> to vector<4x31xf32>
      %76 = tpu.concatenate %74, %75 in 1 : vector<4x1xf32>, vector<4x31xf32> -> vector<4x32xf32>
      %77 = arith.mulf %25, %76 : vector<4x32xf32>
      %78 = vector.extract_strided_slice %73 {offsets = [0, 1], sizes = [4, 31], strides = [1, 1]} : vector<4x32xf32> to vector<4x31xf32>
      %79 = vector.extract_strided_slice %73 {offsets = [0, 0], sizes = [4, 1], strides = [1, 1]} : vector<4x32xf32> to vector<4x1xf32>
      %80 = tpu.concatenate %78, %79 in 1 : vector<4x31xf32>, vector<4x1xf32> -> vector<4x32xf32>
      %81 = arith.mulf %29, %80 : vector<4x32xf32>
      %82 = tpu.concatenate %77, %73, %81 in 0 : vector<4x32xf32>, vector<4x32xf32>, vector<4x32xf32> -> vector<12x32xf32>
      %cst_19 = arith.constant dense<0.000000e+00> : vector<4x32xf32>
      %83 = tpu.matmul %1, %82, %cst_19 {dimension_numbers = #tpu.dot_dimension_numbers<[1], [0], [0], [1], [0, 0, 1, 1], [], []>} : vector<4x12xf32>, vector<12x32xf32>, vector<4x32xf32> -> vector<4x32xf32>
      %84 = arith.addf %83, %4 : vector<4x32xf32>
      %85 = math.tanh %84 : vector<4x32xf32>
      %cst_20 = arith.constant 0.977777779 : f32
      %86 = vector.broadcast %cst_20 : f32 to vector<4x32xf32>
      %87 = arith.mulf %86, %48 : vector<4x32xf32>
      %cst_21 = arith.constant -3.73333335 : f32
      %88 = vector.broadcast %cst_21 : f32 to vector<4x32xf32>
      %89 = arith.mulf %88, %65 : vector<4x32xf32>
      %90 = arith.addf %87, %89 : vector<4x32xf32>
      %cst_22 = arith.constant 3.55555558 : f32
      %91 = vector.broadcast %cst_22 : f32 to vector<4x32xf32>
      %92 = arith.mulf %91, %85 : vector<4x32xf32>
      %93 = arith.addf %90, %92 : vector<4x32xf32>
      %94 = vector.broadcast %33 : f32 to vector<4x32xf32>
      %95 = arith.mulf %94, %93 : vector<4x32xf32>
      %96 = arith.addf %arg7, %95 : vector<4x32xf32>
      %97 = vector.extract_strided_slice %96 {offsets = [0, 31], sizes = [4, 1], strides = [1, 1]} : vector<4x32xf32> to vector<4x1xf32>
      %98 = vector.extract_strided_slice %96 {offsets = [0, 0], sizes = [4, 31], strides = [1, 1]} : vector<4x32xf32> to vector<4x31xf32>
      %99 = tpu.concatenate %97, %98 in 1 : vector<4x1xf32>, vector<4x31xf32> -> vector<4x32xf32>
      %100 = arith.mulf %25, %99 : vector<4x32xf32>
      %101 = vector.extract_strided_slice %96 {offsets = [0, 1], sizes = [4, 31], strides = [1, 1]} : vector<4x32xf32> to vector<4x31xf32>
      %102 = vector.extract_strided_slice %96 {offsets = [0, 0], sizes = [4, 1], strides = [1, 1]} : vector<4x32xf32> to vector<4x1xf32>
      %103 = tpu.concatenate %101, %102 in 1 : vector<4x31xf32>, vector<4x1xf32> -> vector<4x32xf32>
      %104 = arith.mulf %29, %103 : vector<4x32xf32>
      %105 = tpu.concatenate %100, %96, %104 in 0 : vector<4x32xf32>, vector<4x32xf32>, vector<4x32xf32> -> vector<12x32xf32>
      %cst_23 = arith.constant dense<0.000000e+00> : vector<4x32xf32>
      %106 = tpu.matmul %1, %105, %cst_23 {dimension_numbers = #tpu.dot_dimension_numbers<[1], [0], [0], [1], [0, 0, 1, 1], [], []>} : vector<4x12xf32>, vector<12x32xf32>, vector<4x32xf32> -> vector<4x32xf32>
      %107 = arith.addf %106, %4 : vector<4x32xf32>
      %108 = math.tanh %107 : vector<4x32xf32>
      %cst_24 = arith.constant 2.95259857 : f32
      %109 = vector.broadcast %cst_24 : f32 to vector<4x32xf32>
      %110 = arith.mulf %109, %48 : vector<4x32xf32>
      %cst_25 = arith.constant -11.5957937 : f32
      %111 = vector.broadcast %cst_25 : f32 to vector<4x32xf32>
      %112 = arith.mulf %111, %65 : vector<4x32xf32>
      %113 = arith.addf %110, %112 : vector<4x32xf32>
      %cst_26 = arith.constant 9.82289314 : f32
      %114 = vector.broadcast %cst_26 : f32 to vector<4x32xf32>
      %115 = arith.mulf %114, %85 : vector<4x32xf32>
      %116 = arith.addf %113, %115 : vector<4x32xf32>
      %cst_27 = arith.constant -0.290809333 : f32
      %117 = vector.broadcast %cst_27 : f32 to vector<4x32xf32>
      %118 = arith.mulf %117, %108 : vector<4x32xf32>
      %119 = arith.addf %116, %118 : vector<4x32xf32>
      %120 = vector.broadcast %33 : f32 to vector<4x32xf32>
      %121 = arith.mulf %120, %119 : vector<4x32xf32>
      %122 = arith.addf %arg7, %121 : vector<4x32xf32>
      %123 = vector.extract_strided_slice %122 {offsets = [0, 31], sizes = [4, 1], strides = [1, 1]} : vector<4x32xf32> to vector<4x1xf32>
      %124 = vector.extract_strided_slice %122 {offsets = [0, 0], sizes = [4, 31], strides = [1, 1]} : vector<4x32xf32> to vector<4x31xf32>
      %125 = tpu.concatenate %123, %124 in 1 : vector<4x1xf32>, vector<4x31xf32> -> vector<4x32xf32>
      %126 = arith.mulf %25, %125 : vector<4x32xf32>
      %127 = vector.extract_strided_slice %122 {offsets = [0, 1], sizes = [4, 31], strides = [1, 1]} : vector<4x32xf32> to vector<4x31xf32>
      %128 = vector.extract_strided_slice %122 {offsets = [0, 0], sizes = [4, 1], strides = [1, 1]} : vector<4x32xf32> to vector<4x1xf32>
      %129 = tpu.concatenate %127, %128 in 1 : vector<4x31xf32>, vector<4x1xf32> -> vector<4x32xf32>
      %130 = arith.mulf %29, %129 : vector<4x32xf32>
      %131 = tpu.concatenate %126, %122, %130 in 0 : vector<4x32xf32>, vector<4x32xf32>, vector<4x32xf32> -> vector<12x32xf32>
      %cst_28 = arith.constant dense<0.000000e+00> : vector<4x32xf32>
      %132 = tpu.matmul %1, %131, %cst_28 {dimension_numbers = #tpu.dot_dimension_numbers<[1], [0], [0], [1], [0, 0, 1, 1], [], []>} : vector<4x12xf32>, vector<12x32xf32>, vector<4x32xf32> -> vector<4x32xf32>
      %133 = arith.addf %132, %4 : vector<4x32xf32>
      %134 = math.tanh %133 : vector<4x32xf32>
      %cst_29 = arith.constant 2.84627533 : f32
      %135 = vector.broadcast %cst_29 : f32 to vector<4x32xf32>
      %136 = arith.mulf %135, %48 : vector<4x32xf32>
      %cst_30 = arith.constant -10.757576 : f32
      %137 = vector.broadcast %cst_30 : f32 to vector<4x32xf32>
      %138 = arith.mulf %137, %65 : vector<4x32xf32>
      %139 = arith.addf %136, %138 : vector<4x32xf32>
      %cst_31 = arith.constant 8.90642261 : f32
      %140 = vector.broadcast %cst_31 : f32 to vector<4x32xf32>
      %141 = arith.mulf %140, %85 : vector<4x32xf32>
      %142 = arith.addf %139, %141 : vector<4x32xf32>
      %cst_32 = arith.constant 0.278409094 : f32
      %143 = vector.broadcast %cst_32 : f32 to vector<4x32xf32>
      %144 = arith.mulf %143, %108 : vector<4x32xf32>
      %145 = arith.addf %142, %144 : vector<4x32xf32>
      %cst_33 = arith.constant -0.273531318 : f32
      %146 = vector.broadcast %cst_33 : f32 to vector<4x32xf32>
      %147 = arith.mulf %146, %134 : vector<4x32xf32>
      %148 = arith.addf %145, %147 : vector<4x32xf32>
      %149 = vector.broadcast %33 : f32 to vector<4x32xf32>
      %150 = arith.mulf %149, %148 : vector<4x32xf32>
      %151 = arith.addf %arg7, %150 : vector<4x32xf32>
      %152 = vector.extract_strided_slice %151 {offsets = [0, 31], sizes = [4, 1], strides = [1, 1]} : vector<4x32xf32> to vector<4x1xf32>
      %153 = vector.extract_strided_slice %151 {offsets = [0, 0], sizes = [4, 31], strides = [1, 1]} : vector<4x32xf32> to vector<4x31xf32>
      %154 = tpu.concatenate %152, %153 in 1 : vector<4x1xf32>, vector<4x31xf32> -> vector<4x32xf32>
      %155 = arith.mulf %25, %154 : vector<4x32xf32>
      %156 = vector.extract_strided_slice %151 {offsets = [0, 1], sizes = [4, 31], strides = [1, 1]} : vector<4x32xf32> to vector<4x31xf32>
      %157 = vector.extract_strided_slice %151 {offsets = [0, 0], sizes = [4, 1], strides = [1, 1]} : vector<4x32xf32> to vector<4x1xf32>
      %158 = tpu.concatenate %156, %157 in 1 : vector<4x31xf32>, vector<4x1xf32> -> vector<4x32xf32>
      %159 = arith.mulf %29, %158 : vector<4x32xf32>
      %160 = tpu.concatenate %155, %151, %159 in 0 : vector<4x32xf32>, vector<4x32xf32>, vector<4x32xf32> -> vector<12x32xf32>
      %cst_34 = arith.constant dense<0.000000e+00> : vector<4x32xf32>
      %161 = tpu.matmul %1, %160, %cst_34 {dimension_numbers = #tpu.dot_dimension_numbers<[1], [0], [0], [1], [0, 0, 1, 1], [], []>} : vector<4x12xf32>, vector<12x32xf32>, vector<4x32xf32> -> vector<4x32xf32>
      %162 = arith.addf %161, %4 : vector<4x32xf32>
      %163 = math.tanh %162 : vector<4x32xf32>
      %cst_35 = arith.constant 0.0911458358 : f32
      %164 = vector.broadcast %cst_35 : f32 to vector<4x32xf32>
      %165 = arith.mulf %164, %48 : vector<4x32xf32>
      %cst_36 = arith.constant 0.449236304 : f32
      %166 = vector.broadcast %cst_36 : f32 to vector<4x32xf32>
      %167 = arith.mulf %166, %85 : vector<4x32xf32>
      %168 = arith.addf %165, %167 : vector<4x32xf32>
      %cst_37 = arith.constant 0.651041686 : f32
      %169 = vector.broadcast %cst_37 : f32 to vector<4x32xf32>
      %170 = arith.mulf %169, %108 : vector<4x32xf32>
      %171 = arith.addf %168, %170 : vector<4x32xf32>
      %cst_38 = arith.constant -0.322376192 : f32
      %172 = vector.broadcast %cst_38 : f32 to vector<4x32xf32>
      %173 = arith.mulf %172, %134 : vector<4x32xf32>
      %174 = arith.addf %171, %173 : vector<4x32xf32>
      %cst_39 = arith.constant 0.130952388 : f32
      %175 = vector.broadcast %cst_39 : f32 to vector<4x32xf32>
      %176 = arith.mulf %175, %163 : vector<4x32xf32>
      %177 = arith.addf %174, %176 : vector<4x32xf32>
      %178 = vector.broadcast %33 : f32 to vector<4x32xf32>
      %179 = arith.mulf %178, %177 : vector<4x32xf32>
      %180 = arith.addf %arg7, %179 : vector<4x32xf32>
      scf.yield %180 : vector<4x32xf32>
    }
    %c0_12 = arith.constant 0 : index
    %c0_13 = arith.constant 0 : index
    %36 = vector.load %arg5[%c0_12, %c0_13] : memref<4x32xf32, #tpu.memory_space<vmem>>, vector<4x32xf32>
    tpu.vector_store %arg5[%c0_12, %c0_13], %35 {strides = array<i32>} : memref<4x32xf32, #tpu.memory_space<vmem>>, vector<4x32xf32>,
    return
  }
  func.func @transform_0(%arg0: i32) -> i32 {
    %c0_i32 = arith.constant 0 : i32
    %c0_i32_0 = arith.constant 0 : i32
    return %c0_i32 : i32
  }
  func.func @transform_1(%arg0: i32) -> (i32, i32) {
    %c0_i32 = arith.constant 0 : i32
    %c0_i32_0 = arith.constant 0 : i32
    return %c0_i32, %arg0 : i32, i32
  }
  func.func @transform_2(%arg0: i32) -> (i32, i32) {
    %c0_i32 = arith.constant 0 : i32
    %c0_i32_0 = arith.constant 0 : i32
    %c0_i32_1 = arith.constant 0 : i32
    return %c0_i32, %c0_i32_0 : i32, i32
  }
  func.func @transform_3(%arg0: i32) -> (i32, i32) {
    %c0_i32 = arith.constant 0 : i32
    %c0_i32_0 = arith.constant 0 : i32
    %c0_i32_1 = arith.constant 0 : i32
    return %c0_i32, %c0_i32_0 : i32, i32
  }
  func.func @transform_4(%arg0: i32) -> (i32, i32) {
    %c0_i32 = arith.constant 0 : i32
    %c0_i32_0 = arith.constant 0 : i32
    return %c0_i32, %arg0 : i32, i32
  }
}

</mosaic_0001>

<llo_original>
// kernel: ode_block_forward.1
$region0: #{ode_block_forward.1}
  #allocation0 [shape = 'u32[]', space=smem, size = 0x4, offset = 0x4, fixed_abs, tag = 'smem constant byte address 0x4 - core index']
  #allocation1 [shape = 'u32[72,128]{1,0:T(1,128)}', space=vmem, size = 0x9000, scoped, tag = 'internal scratch']
  %s0 = inlined_call_operand.vmem [shape: f32[2], index: 0, kind: input, shape index: {}]
  %s1 = inlined_call_operand.vmem [shape: f32[4,32], index: 1, kind: input, shape index: {}, may-alias: {1,4}]
  %s2 = inlined_call_operand.vmem [shape: f32[4,12], index: 2, kind: input, shape index: {}]
  %s3 = inlined_call_operand.vmem [shape: f32[4,1], index: 3, kind: input, shape index: {}]
  %s4 = inlined_call_operand.vmem [shape: f32[4,32], index: 4, kind: output, shape index: {}, may-alias: {1,4}]
  %s5 = sld [smem:[#allocation0]]
  $region37: #{ode_block_forward.1} parent=0
    _
  %s7 = ssub.s32 1, %s5
  %s8 = scalar_select 0, %s7, %s5
  $region1: #{ode_block_forward.1} parent=0
    #allocation2 [shape = 'u8[512]{0}', space=smem, size = 0x200, scoped, tag = 'input window, operand 0, single buffered']
    #allocation3 [shape = 's32[1]{0}', space=sflag, size = 0x4, scoped, tag = 'scoped memory for ode_block_forward.1']
    %9 = vsyncpa [#allocation3], 0
    // Predicated region
    $region2: #{ode_block_forward.1} parent=1 // pred_check
      _
    $region3: #{ode_block_forward.1} parent=1 // pred_check_branch
      %11 = sbr.rel (0) target = $region5
    $region4: #{ode_block_forward.1} parent=1 // pred_region
      %13 = vsyncadd [#allocation3], 0
      %s15 = sshll.u32 %s0, 4
      %s16 = int_to_ptr.vmem [resolvable:$true] %s15
      %18 = dma.vmem_to_smem %s16, 16, [#allocation2], [#allocation3]
    $region5: #{ode_block_forward.1} parent=1 // pred_fallthru
      _
    // Predicated region
    $region6: #{ode_block_forward.1} parent=1 // pred_check
      _
    $region7: #{ode_block_forward.1} parent=1 // pred_check_branch
      %20 = sbr.rel (0) target = $region9
    $region8: #{ode_block_forward.1} parent=1 // pred_region
      _
    $region9: #{ode_block_forward.1} parent=1 // pred_fallthru
      _
    // Predicated region
    $region10: #{ode_block_forward.1} parent=1 // pred_check
      _
    $region11: #{ode_block_forward.1} parent=1 // pred_check_branch
      %22 = sbr.rel (0) target = $region13
    $region12: #{ode_block_forward.1} parent=1 // pred_region
      _
    $region13: #{ode_block_forward.1} parent=1 // pred_fallthru
      _
    // Predicated region
    $region14: #{ode_block_forward.1} parent=1 // pred_check
      _
    $region15: #{ode_block_forward.1} parent=1 // pred_check_branch
      %24 = sbr.rel (0) target = $region17
    $region16: #{ode_block_forward.1} parent=1 // pred_region
      _
    $region17: #{ode_block_forward.1} parent=1 // pred_fallthru
      _
    // Predicated region
    $region18: #{ode_block_forward.1} parent=1 // pred_check
      _
    $region19: #{ode_block_forward.1} parent=1 // pred_check_branch
      %26 = sbr.rel (0) target = $region21
    $region20: #{ode_block_forward.1} parent=1 // pred_region
      %28 = dma.done [#allocation3], 16
    $region21: #{ode_block_forward.1} parent=1 // pred_fallthru
      _
    %29 = sfence
    %v30 = vld [vmem:[%s1] sm:$0xf]
    %v31 = vld [vmem:[%s2] sm:$0xf]
    %v32 = vld [vmem:[%s3] sm:$0xf]
    %34 = vset.pattern.permute.xlu0 0
    %35 = vperm.xlu0 %34, %v32
    %v36 = vpop.permute.xlu0 %35
    %v38 = vlaneseq
    %v39 = vand.u32 %v38, 127
    %vm40 = vcmp.lt.s32.totalorder %v39, 0
    %v41 = vsub.s32 0, %v39
    %v42 = vsel %vm40, %v41, %v39
    %v43 = vshrl.u32 %v42, 4
    %v44 = vand.u32 %v42, 15
    %v45 = vsub.s32 0, %v44
    %v46 = vsel %vm40, %v45, %v44
    %vm47 = vcmp.ne.s32.totalorder %v46, 0
    %vm48 = vcmp.lt.s32.totalorder %v46, 0
    %vm49 = vmand %vm48, %vm47
    %v50 = vadd.s32 %v46, 16
    %v51 = vsel %vm49, %v50, %v46
    %vm52 = vcmp.ne.s32.totalorder %v51, 0
    %v53 = vsel %vm52, 1, 0
    %v54 = vcvt.s32.f32 %v53
    %vm55 = vcmp.ne.s32.totalorder %v51, 15
    %v56 = vsel %vm55, 1, 0
    %v57 = vcvt.s32.f32 %v56
    %s58 = sld [smem:[#allocation2 + $0x1]]
    %s59 = sld [smem:[#allocation2]]
    %s60 = ssub.f32 %s58, %s59
    %v61 = vrcp.pop 8.0
    %v62 = vmul.f32 8.0, %v61
    %v63 = vsub.f32 1.0, %v62
    %v64 = vmul.f32 %v61, %v63
    %v65 = vadd.f32 %v61, %v64
    %vm66 = vweird.f32 %v61
    %v67 = vsel %vm66, %v61, %v65
    %s68 = vtos %v67
    %s69 = smul.f32 %s60, %s68
    loop: start=0, step=1, limit=8
    $region22: #{ode_block_forward.1} parent=1 // loop_pre_header
      _
    $region23: #{ode_block_forward.1} parent=1 // loop_header
      %s71 = sphi 0, %s75
      %p72 = scmp.ge.s32.totalorder %s71, 8
      %v76 = vphi %v30, %v394
    $region24: #{ode_block_forward.1} parent=1 // loop_header_branch
      %74 = sbr.rel (%p72) target = $region28
    $region25: #{ode_block_forward.1} parent=1 // loop_body
      %78 = vrot.lane.b32.xlu0 %v76, 97
      %v79 = vpop.permute.xlu0 %78
      %81 = vrot.lane.b32.xlu0 %v76, 1
      %v82 = vpop.permute.xlu0 %81
      %vm84 = vcmask 7168
      %v85 = vsel %vm84, %v79, %v82
      %v86 = vmul.f32 %v54, %v85
      %87 = vrot.lane.b32.xlu0 %v76, 127
      %v88 = vpop.permute.xlu0 %87
      %90 = vrot.lane.b32.xlu0 %v76, 31
      %v91 = vpop.permute.xlu0 %90
      %vm93 = vcmask 252928
      %v94 = vsel %vm93, %v88, %v91
      %v95 = vmul.f32 %v57, %v94
      %v96 = vrot.slane %v76, 4
      %vm98 = vcmask 1043456
      %v99 = vsel %vm98, %v86, %v96
      %vm100 = vcmask 97280
      %v102 = vsel %vm100, %v31, 0
      %v105 = vsel %vm98, %v95, 0
      %107 = vmatpush.msra.mxu0 0.0
      %108 = vmatpush.msra.mxu0 0.0
      %109 = vmatpush.msra.mxu0 0.0
      %110 = vmatpush.msra.mxu0 0.0
      %111 = vmatpush.msra.mxu0 0.0
      %112 = vmatpush.msra.mxu0 0.0
      %113 = vmatpush.msra.mxu0 0.0
      %114 = vmatpush.msra.mxu0 0.0
      %115 = vmatpush.msra.mxu0 0.0
      %116 = vmatpush.msra.mxu0 0.0
      %117 = vmatpush.msra.mxu0 0.0
      %118 = vmatpush.msra.mxu0 0.0
      %119 = vmatpush.msra.mxu0 0.0
      %120 = vmatpush.msra.mxu0 0.0
      %121 = vmatpush.msra.mxu0 %v105
      %122 = vmatpush.msra.mxu0 %v99
      %123 = vmatmul.f32.gmra.mxu0 %v102
      %v124 = vpop.f32.mrf.mxu0
      %v125 = vadd.f32 %v36, %v124
      %126 = vdwg.mxu0
      %v127 = vtanh.pop %v125
      %v128 = vmul.f32 %v127, 0.2
      %v129 = vstv %s69
      %v130 = vmul.f32 %v129, %v128
      %v131 = vadd.f32 %v76, %v130
      %133 = vrot.lane.b32.xlu0 %v131, 97
      %v134 = vpop.permute.xlu0 %133
      %136 = vrot.lane.b32.xlu0 %v131, 1
      %v137 = vpop.permute.xlu0 %136
      %v139 = vsel %vm84, %v134, %v137
      %v140 = vmul.f32 %v54, %v139
      %141 = vrot.lane.b32.xlu0 %v131, 127
      %v142 = vpop.permute.xlu0 %141
      %144 = vrot.lane.b32.xlu0 %v131, 31
      %v145 = vpop.permute.xlu0 %144
      %v147 = vsel %vm93, %v142, %v145
      %v148 = vmul.f32 %v57, %v147
      %v149 = vrot.slane %v131, 4
      %v151 = vsel %vm98, %v140, %v149
      %v153 = vsel %vm98, %v148, 0
      %155 = vmatpush.msra.mxu0 0.0
      %156 = vmatpush.msra.mxu0 0.0
      %157 = vmatpush.msra.mxu0 0.0
      %158 = vmatpush.msra.mxu0 0.0
      %159 = vmatpush.msra.mxu0 0.0
      %160 = vmatpush.msra.mxu0 0.0
      %161 = vmatpush.msra.mxu0 0.0
      %162 = vmatpush.msra.mxu0 0.0
      %163 = vmatpush.msra.mxu0 0.0
      %164 = vmatpush.msra.mxu0 0.0
      %165 = vmatpush.msra.mxu0 0.0
      %166 = vmatpush.msra.mxu0 0.0
      %167 = vmatpush.msra.mxu0 0.0
      %168 = vmatpush.msra.mxu0 0.0
      %169 = vmatpush.msra.mxu0 %v153
      %170 = vmatpush.msra.mxu0 %v151
      %171 = vmatmul.f32.gmra.mxu0 %v102
      %v172 = vpop.f32.mrf.mxu0
      %v173 = vadd.f32 %v36, %v172
      %174 = vdwg.mxu0
      %v175 = vtanh.pop %v173
      %v176 = vmul.f32 %v127, 0.075
      %v177 = vmul.f32 %v175, 0.225
      %v178 = vadd.f32 %v176, %v177
      %v179 = vmul.f32 %v129, %v178
      %v180 = vadd.f32 %v76, %v179
      %182 = vrot.lane.b32.xlu0 %v180, 97
      %v183 = vpop.permute.xlu0 %182
      %185 = vrot.lane.b32.xlu0 %v180, 1
      %v186 = vpop.permute.xlu0 %185
      %v188 = vsel %vm84, %v183, %v186
      %v189 = vmul.f32 %v54, %v188
      %190 = vrot.lane.b32.xlu0 %v180, 127
      %v191 = vpop.permute.xlu0 %190
      %193 = vrot.lane.b32.xlu0 %v180, 31
      %v194 = vpop.permute.xlu0 %193
      %v196 = vsel %vm93, %v191, %v194
      %v197 = vmul.f32 %v57, %v196
      %v198 = vrot.slane %v180, 4
      %v200 = vsel %vm98, %v189, %v198
      %v202 = vsel %vm98, %v197, 0
      %204 = vmatpush.msra.mxu0 0.0
      %205 = vmatpush.msra.mxu0 0.0
      %206 = vmatpush.msra.mxu0 0.0
      %207 = vmatpush.msra.mxu0 0.0
      %208 = vmatpush.msra.mxu0 0.0
      %209 = vmatpush.msra.mxu0 0.0
      %210 = vmatpush.msra.mxu0 0.0
      %211 = vmatpush.msra.mxu0 0.0
      %212 = vmatpush.msra.mxu0 0.0
      %213 = vmatpush.msra.mxu0 0.0
      %214 = vmatpush.msra.mxu0 0.0
      %215 = vmatpush.msra.mxu0 0.0
      %216 = vmatpush.msra.mxu0 0.0
      %217 = vmatpush.msra.mxu0 0.0
      %218 = vmatpush.msra.mxu0 %v202
      %219 = vmatpush.msra.mxu0 %v200
      %220 = vmatmul.f32.gmra.mxu0 %v102
      %v221 = vpop.f32.mrf.mxu0
      %v222 = vadd.f32 %v36, %v221
      %223 = vdwg.mxu0
      %v224 = vtanh.pop %v222
      %v225 = vmul.f32 %v127, 0.9777778
      %v226 = vmul.f32 %v175, -3.7333333
      %v227 = vadd.f32 %v225, %v226
      %v228 = vmul.f32 %v224, 3.5555556
      %v229 = vadd.f32 %v227, %v228
      %v230 = vmul.f32 %v129, %v229
      %v231 = vadd.f32 %v76, %v230
      %233 = vrot.lane.b32.xlu0 %v231, 97
      %v234 = vpop.permute.xlu0 %233
      %236 = vrot.lane.b32.xlu0 %v231, 1
      %v237 = vpop.permute.xlu0 %236
      %v239 = vsel %vm84, %v234, %v237
      %v240 = vmul.f32 %v54, %v239
      %241 = vrot.lane.b32.xlu0 %v231, 127
      %v242 = vpop.permute.xlu0 %241
      %244 = vrot.lane.b32.xlu0 %v231, 31
      %v245 = vpop.permute.xlu0 %244
      %v247 = vsel %vm93, %v242, %v245
      %v248 = vmul.f32 %v57, %v247
      %v249 = vrot.slane %v231, 4
      %v251 = vsel %vm98, %v240, %v249
      %v253 = vsel %vm98, %v248, 0
      %255 = vmatpush.msra.mxu0 0.0
      %256 = vmatpush.msra.mxu0 0.0
      %257 = vmatpush.msra.mxu0 0.0
      %258 = vmatpush.msra.mxu0 0.0
      %259 = vmatpush.msra.mxu0 0.0
      %260 = vmatpush.msra.mxu0 0.0
      %261 = vmatpush.msra.mxu0 0.0
      %262 = vmatpush.msra.mxu0 0.0
      %263 = vmatpush.msra.mxu0 0.0
      %264 = vmatpush.msra.mxu0 0.0
      %265 = vmatpush.msra.mxu0 0.0
      %266 = vmatpush.msra.mxu0 0.0
      %267 = vmatpush.msra.mxu0 0.0
      %268 = vmatpush.msra.mxu0 0.0
      %269 = vmatpush.msra.mxu0 %v253
      %270 = vmatpush.msra.mxu0 %v251
      %271 = vmatmul.f32.gmra.mxu0 %v102
      %v272 = vpop.f32.mrf.mxu0
      %v273 = vadd.f32 %v36, %v272
      %274 = vdwg.mxu0
      %v275 = vtanh.pop %v273
      %v276 = vmul.f32 %v127, 2.9525986
      %v277 = vmul.f32 %v175, -11.595794
      %v278 = vadd.f32 %v276, %v277
      %v279 = vmul.f32 %v224, 9.822893
      %v280 = vadd.f32 %v278, %v279
      %v281 = vmul.f32 %v275, -0.29080933
      %v282 = vadd.f32 %v280, %v281
      %v283 = vmul.f32 %v129, %v282
      %v284 = vadd.f32 %v76, %v283
      %286 = vrot.lane.b32.xlu0 %v284, 97
      %v287 = vpop.permute.xlu0 %286
      %289 = vrot.lane.b32.xlu0 %v284, 1
      %v290 = vpop.permute.xlu0 %289
      %v292 = vsel %vm84, %v287, %v290
      %v293 = vmul.f32 %v54, %v292
      %294 = vrot.lane.b32.xlu0 %v284, 127
      %v295 = vpop.permute.xlu0 %294
      %297 = vrot.lane.b32.xlu0 %v284, 31
      %v298 = vpop.permute.xlu0 %297
      %v300 = vsel %vm93, %v295, %v298
      %v301 = vmul.f32 %v57, %v300
      %v302 = vrot.slane %v284, 4
      %v304 = vsel %vm98, %v293, %v302
      %v306 = vsel %vm98, %v301, 0
      %308 = vmatpush.msra.mxu0 0.0
      %309 = vmatpush.msra.mxu0 0.0
      %310 = vmatpush.msra.mxu0 0.0
      %311 = vmatpush.msra.mxu0 0.0
      %312 = vmatpush.msra.mxu0 0.0
      %313 = vmatpush.msra.mxu0 0.0
      %314 = vmatpush.msra.mxu0 0.0
      %315 = vmatpush.msra.mxu0 0.0
      %316 = vmatpush.msra.mxu0 0.0
      %317 = vmatpush.msra.mxu0 0.0
      %318 = vmatpush.msra.mxu0 0.0
      %319 = vmatpush.msra.mxu0 0.0
      %320 = vmatpush.msra.mxu0 0.0
      %321 = vmatpush.msra.mxu0 0.0
      %322 = vmatpush.msra.mxu0 %v306
      %323 = vmatpush.msra.mxu0 %v304
      %324 = vmatmul.f32.gmra.mxu0 %v102
      %v325 = vpop.f32.mrf.mxu0
      %v326 = vadd.f32 %v36, %v325
      %327 = vdwg.mxu0
      %v328 = vtanh.pop %v326
      %v329 = vmul.f32 %v127, 2.8462753
      %v330 = vmul.f32 %v175, -10.757576
      %v331 = vadd.f32 %v329, %v330
      %v332 = vmul.f32 %v224, 8.906423
      %v333 = vadd.f32 %v331, %v332
      %v334 = vmul.f32 %v275, 0.2784091
      %v335 = vadd.f32 %v333, %v334
      %v336 = vmul.f32 %v328, -0.27353132
      %v337 = vadd.f32 %v335, %v336
      %v338 = vmul.f32 %v129, %v337
      %v339 = vadd.f32 %v76, %v338
      %341 = vrot.lane.b32.xlu0 %v339, 97
      %v342 = vpop.permute.xlu0 %341
      %344 = vrot.lane.b32.xlu0 %v339, 1
      %v345 = vpop.permute.xlu0 %344
      %v347 = vsel %vm84, %v342, %v345
      %v348 = vmul.f32 %v54, %v347
      %349 = vrot.lane.b32.xlu0 %v339, 127
      %v350 = vpop.permute.xlu0 %349
      %352 = vrot.lane.b32.xlu0 %v339, 31
      %v353 = vpop.permute.xlu0 %352
      %v355 = vsel %vm93, %v350, %v353
      %v356 = vmul.f32 %v57, %v355
      %v357 = vrot.slane %v339, 4
      %v359 = vsel %vm98, %v348, %v357
      %v361 = vsel %vm98, %v356, 0
      %363 = vmatpush.msra.mxu0 0.0
      %364 = vmatpush.msra.mxu0 0.0
      %365 = vmatpush.msra.mxu0 0.0
      %366 = vmatpush.msra.mxu0 0.0
      %367 = vmatpush.msra.mxu0 0.0
      %368 = vmatpush.msra.mxu0 0.0
      %369 = vmatpush.msra.mxu0 0.0
      %370 = vmatpush.msra.mxu0 0.0
      %371 = vmatpush.msra.mxu0 0.0
      %372 = vmatpush.msra.mxu0 0.0
      %373 = vmatpush.msra.mxu0 0.0
      %374 = vmatpush.msra.mxu0 0.0
      %375 = vmatpush.msra.mxu0 0.0
      %376 = vmatpush.msra.mxu0 0.0
      %377 = vmatpush.msra.mxu0 %v361
      %378 = vmatpush.msra.mxu0 %v359
      %379 = vmatmul.f32.gmra.mxu0 %v102
      %v380 = vpop.f32.mrf.mxu0
      %v381 = vadd.f32 %v36, %v380
      %382 = vdwg.mxu0
      %v383 = vtanh.pop %v381
      %v384 = vmul.f32 %v127, 0.091145836
      %v385 = vmul.f32 %v224, 0.4492363
      %v386 = vadd.f32 %v384, %v385
      %v387 = vmul.f32 %v275, 0.6510417
      %v388 = vadd.f32 %v386, %v387
      %v389 = vmul.f32 %v328, -0.3223762
      %v390 = vadd.f32 %v388, %v389
      %v391 = vmul.f32 %v383, 0.13095239
      %v392 = vadd.f32 %v390, %v391
      %v393 = vmul.f32 %v129, %v392
      %v394 = vadd.f32 %v76, %v393
    $region26: #{ode_block_forward.1} parent=1 // loop_footer
      %s75 = sadd.s32 1, %s71
    $region27: #{ode_block_forward.1} parent=1 // loop_footer_branch
      %70 = sbr.rel target = $region23
    $region28: #{ode_block_forward.1} parent=1 // loop_exit
      _
    %vm395 = vcmask 257024
    %396 = vst.msk [vmem:[%s4] sm:$0xf] %vm395, %v76
    // Predicated region
    $region29: #{ode_block_forward.1} parent=1 // pred_check
      _
    $region30: #{ode_block_forward.1} parent=1 // pred_check_branch
      %398 = sbr.rel (0) target = $region32
    $region31: #{ode_block_forward.1} parent=1 // pred_region
      _
    $region32: #{ode_block_forward.1} parent=1 // pred_fallthru
      _
    // Predicated region
    $region33: #{ode_block_forward.1} parent=1 // pred_check
      _
    $region34: #{ode_block_forward.1} parent=1 // pred_check_branch
      %400 = sbr.rel (0) target = $region36
    $region35: #{ode_block_forward.1} parent=1 // pred_region
      _
    $region36: #{ode_block_forward.1} parent=1 // pred_fallthru
      _
    %401 = vsyncpa [#allocation3], 1

</llo_original>
